<compile_context>
chip_gen: v7x
topology: tpu7x:2x2x1
jax: 0.10.0
libtpu: 0.0.40
codegen_flags: <defaults>
</compile_context>

<pallas_src>
import numpy as np
import jax
import jax.numpy as jnp
from jax import lax
from jax.experimental import pallas as pl
from jax.experimental.pallas import tpu as pltpu


def _round_up(x, m):
    return (x + m - 1) // m * m


def _vmem_limit_bytes():
    # Generation-aware scoped-VMEM cap: ~48 MiB on 128 MiB chips (v5e/v6e),
    # ~36 MiB on 64 MiB chips (v7x).
    try:
        cap = int(getattr(pltpu.get_tpu_info(), "vmem_capacity_bytes", 128 << 20))
    except Exception:
        cap = 128 << 20
    return (48 << 20) if cap >= (128 << 20) else (36 << 20)


# --------------------------------------------------------------------------- #
# Phase 1: masked MLP + input-to-hidden projection (parallel over time tiles)  #
# --------------------------------------------------------------------------- #
def ff_kernel(len_ref, emb_ref, mlp_w_ref, mlp_b_ref, wih_ref, b_ref,
              embm_ref, gx_ref):
    tT, Bp, E = emb_ref.shape
    V = mlp_w_ref.shape[1]
    G4 = wih_ref.shape[1]

    # MLP: ReLU(Linear(E -> V)) as one tall 2-D matmul (bf16 in, f32 acc).
    x2 = emb_ref[...].reshape(tT * Bp, E)                       # bf16
    mlp2 = jnp.dot(x2, mlp_w_ref[...],
                   preferred_element_type=jnp.float32) + mlp_b_ref[...]
    mlp2 = jnp.maximum(mlp2, 0.0)                               # (tT*Bp, V) f32

    # pad_packed semantics: zero positions t >= length_b.
    t0 = pl.program_id(0) * tT
    t_idx = t0 + lax.broadcasted_iota(jnp.int32, (tT, Bp, 1), 0)
    mask = (t_idx < len_ref[...][None, :, :]).astype(jnp.float32)
    mask2 = mask.reshape(tT * Bp, 1)

    embm2 = mlp2 * mask2
    embm_ref[...] = embm2.reshape(tT, Bp, V)                    # true V (no 8x pad)

    # Hoisted input-to-hidden projection: gates_x = x @ W_ih + b (gate-blocked),
    # stored in bf16 to halve the biggest HBM stream.
    gx2 = jnp.dot(embm2.astype(jnp.bfloat16), wih_ref[...],
                  preferred_element_type=jnp.float32) + b_ref[...]
    gx_ref[...] = gx2.reshape(tT, Bp, G4).astype(jnp.bfloat16)


# --------------------------------------------------------------------------- #
# Phase 2: LSTM recurrence (sequential over time tiles, state in scratch)      #
# --------------------------------------------------------------------------- #
def rec_kernel(len_ref, gx_ref, whh_ref, out_ref, hid_ref, h_scr, c_scr, m_scr):
    tT, Bp, _ = gx_ref.shape
    Hp = whh_ref.shape[0]

    @pl.when(pl.program_id(0) == 0)
    def _():
        h_scr[...] = jnp.zeros_like(h_scr)
        c_scr[...] = jnp.zeros_like(c_scr)

    # Precompute the validity mask for this time tile once.
    t0 = pl.program_id(0) * tT
    t_idx = t0 + lax.broadcasted_iota(jnp.int32, (tT, Bp, 1), 0)
    m_scr[...] = (t_idx < len_ref[...][None, :, :]).astype(jnp.float32)

    def step(i, carry):
        h = h_scr[...]
        c = c_scr[...]
        # Only the sequential part runs per step: h @ W_hh (+ precomputed gates_x).
        # W_hh is read from VMEM here (cheap vld) instead of being pinned in
        # vregs across the whole serial tile.
        gates = gx_ref[i].astype(jnp.float32) + jnp.dot(
            h.astype(jnp.bfloat16), whh_ref[...],
            preferred_element_type=jnp.float32)
        i_g = jax.nn.sigmoid(gates[:, 0 * Hp:1 * Hp])
        f_g = jax.nn.sigmoid(gates[:, 1 * Hp:2 * Hp])
        g_g = jnp.tanh(gates[:, 2 * Hp:3 * Hp])
        o_g = jax.nn.sigmoid(gates[:, 3 * Hp:4 * Hp])
        c_new = f_g * c + i_g * g_g
        h_new = o_g * jnp.tanh(c_new)
        valid = m_scr[i]                                        # (Bp, 1)
        # packed-sequence semantics: state frozen past each sequence's length.
        h_scr[...] = jnp.where(valid > 0, h_new, h)
        c_scr[...] = jnp.where(valid > 0, c_new, c)
        out_ref[i] = h_new * valid
        return carry

    unroll = tT if tT <= 8 else 8
    lax.fori_loop(0, tT, step, 0, unroll=unroll)

    @pl.when(pl.program_id(0) == pl.num_programs(0) - 1)
    def _():
        hid_ref[...] = h_scr[...]


# --------------------------------------------------------------------------- #
# One-time parameter preparation (hoisted out of the per-call wrapper)         #
# --------------------------------------------------------------------------- #
def prepare_params(params):
    """Pad / gate-block weights once: gate k lives in lanes [k*Hp, k*Hp+H) so
    gate slicing in the kernel is a free lane-aligned view."""
    E = params['emb_table'].shape[1]
    V = params['mlp_w'].shape[1]
    H = params['whh'].shape[0]
    Hp = _round_up(H, 128)

    wih_p = jnp.zeros((V, 4 * Hp), jnp.bfloat16)
    whh_p = jnp.zeros((Hp, 4 * Hp), jnp.bfloat16)
    b_p = jnp.zeros((1, 4 * Hp), jnp.float32)
    for g in range(4):
        wih_p = wih_p.at[:, g * Hp:g * Hp + H].set(
            params['wih'][:, g * H:(g + 1) * H].astype(jnp.bfloat16))
        whh_p = whh_p.at[:H, g * Hp:g * Hp + H].set(
            params['whh'][:, g * H:(g + 1) * H].astype(jnp.bfloat16))
        b_p = b_p.at[:, g * Hp:g * Hp + H].set(params['b'][:, g * H:(g + 1) * H])

    return {
        'emb_table': params['emb_table'].astype(jnp.float32),
        'mlp_w': params['mlp_w'].astype(jnp.bfloat16),          # (E, V)
        'mlp_b': params['mlp_b'].astype(jnp.float32).reshape(1, V),
        'wih_p': wih_p, 'whh_p': whh_p, 'b_p': b_p,
        'dims': (E, V, H, Hp),
    }


# --------------------------------------------------------------------------- #
# Wrapper                                                                      #
# --------------------------------------------------------------------------- #
def bilstm_encoder_forward(input_labels, prepped):
    """input_labels: (B, T) int32, 0 == pad (right padded). Returns
    (output[B,Tm,H], hidden[B,H], embedded[B,Tm,V]) with Tm = max length."""
    labels_np = np.asarray(input_labels)
    lengths_np = (labels_np != 0).sum(axis=1).astype(np.int32)
    # pad_packed truncation needs a static max length; guard the all-padding
    # batch (max length 0).
    # TODO(synk): in production bucket max_t to a few static sizes to avoid a
    # host sync / retrace per distinct batch length.
    max_t = max(int(lengths_np.max()), 1)
    labels = jnp.asarray(labels_np[:, :max_t], dtype=jnp.int32)

    B, T = labels.shape
    E, V, H, Hp = prepped['dims']

    # Lane/sublane aligned padded sizes (V stays un-padded: full-dim blocks).
    Bp = _round_up(B, 8)
    Tp = _round_up(T, 8)

    vmem_limit = _vmem_limit_bytes()
    # Derive the time tile from a VMEM byte budget: per grid step the
    # double-buffered blocks cost ~2*tT*Bp*(bf16 emb + f32 embm + bf16 gx) in
    # phase 1 and ~2*tT*Bp*(bf16 gx + f32 out) in phase 2; leave half the
    # scoped limit for weights / scratch / internal scratch.
    budget = vmem_limit // 2
    per_t_ff = 2 * Bp * (2 * E + 4 * V + 2 * 4 * Hp)
    per_t_rec = 2 * Bp * (2 * 4 * Hp + 4 * Hp)
    per_t = max(per_t_ff, per_t_rec)
    tT_budget = max(8, (budget // per_t) // 8 * 8)
    tT = int(min(64, Tp, tT_budget))
    Tp = _round_up(Tp, tT)
    n_tiles = Tp // tT

    # Embedding lookup (gather left to XLA) + Dropout(p=0) identity.
    embedded = prepped['emb_table'][labels]                     # (B, T, E) f32
    emb_tm = jnp.transpose(embedded, (1, 0, 2))                 # (T, B, E)
    emb_tm = jnp.pad(emb_tm, ((0, Tp - T), (0, Bp - B), (0, 0))
                     ).astype(jnp.bfloat16)                     # (Tp, Bp, E)

    len_vec = jnp.zeros((Bp, 1), jnp.int32).at[:B, 0].set(jnp.asarray(lengths_np))

    cp_ff = pltpu.CompilerParams(dimension_semantics=("parallel",),
                                 vmem_limit_bytes=vmem_limit)
    cp_rec = pltpu.CompilerParams(dimension_semantics=("arbitrary",),
                                  vmem_limit_bytes=vmem_limit)

    # ---- phase 1: masked MLP + hoisted input projection (parallel over T) ----
    embm, gx = pl.pallas_call(
        ff_kernel,
        out_shape=(jax.ShapeDtypeStruct((Tp, Bp, V), jnp.float32),
                   jax.ShapeDtypeStruct((Tp, Bp, 4 * Hp), jnp.bfloat16)),
        grid=(n_tiles,),
        in_specs=[
            pl.BlockSpec((Bp, 1), lambda t: (0, 0)),            # lengths
            pl.BlockSpec((tT, Bp, E), lambda t: (t, 0, 0)),     # embedded
            pl.BlockSpec((E, V), lambda t: (0, 0)),             # mlp W
            pl.BlockSpec((1, V), lambda t: (0, 0)),             # mlp b
            pl.BlockSpec((V, 4 * Hp), lambda t: (0, 0)),        # W_ih (gate-blocked)
            pl.BlockSpec((1, 4 * Hp), lambda t: (0, 0)),        # b_ih + b_hh
        ],
        out_specs=(pl.BlockSpec((tT, Bp, V), lambda t: (t, 0, 0)),
                   pl.BlockSpec((tT, Bp, 4 * Hp), lambda t: (t, 0, 0))),
        compiler_params=cp_ff,
    )(len_vec, emb_tm, prepped['mlp_w'], prepped['mlp_b'],
      prepped['wih_p'], prepped['b_p'])

    # ---- phase 2: LSTM recurrence, streaming bf16 gate tiles, state in scratch
    out_tm, hid = pl.pallas_call(
        rec_kernel,
        out_shape=(jax.ShapeDtypeStruct((Tp, Bp, Hp), jnp.float32),
                   jax.ShapeDtypeStruct((Bp, Hp), jnp.float32)),
        grid=(n_tiles,),
        in_specs=[
            pl.BlockSpec((Bp, 1), lambda t: (0, 0)),            # lengths
            pl.BlockSpec((tT, Bp, 4 * Hp), lambda t: (t, 0, 0)),  # gates_x (bf16)
            pl.BlockSpec((Hp, 4 * Hp), lambda t: (0, 0)),       # W_hh
        ],
        out_specs=(pl.BlockSpec((tT, Bp, Hp), lambda t: (t, 0, 0)),
                   pl.BlockSpec((Bp, Hp), lambda t: (0, 0))),
        scratch_shapes=[pltpu.VMEM((Bp, Hp), jnp.float32),      # h
                        pltpu.VMEM((Bp, Hp), jnp.float32),      # c
                        pltpu.VMEM((tT, Bp, 1), jnp.float32)],  # per-tile mask
        compiler_params=cp_rec,
    )(len_vec, gx, prepped['whh_p'])

    # TODO(synk): emit output/embedded batch-major from the kernels to remove
    # this extra XLA transpose pass over the two largest outputs.
    output = jnp.transpose(out_tm[:T, :B, :H], (1, 0, 2))       # (B, T, H)
    embedded_out = jnp.transpose(embm[:T, :B, :], (1, 0, 2))    # (B, T, V)
    hidden = hid[:B, :H]                                        # (B, H)
    return output, hidden, embedded_out


# --------------------------------------------------------------------------- #
# Pure-JAX reference (mirrors the kernel's bf16 matmul inputs / f32 acc and    #
# the bf16 storage of the hoisted input-to-hidden gates)                       #
# --------------------------------------------------------------------------- #
def _reference(input_labels, params):
    labels_np = np.asarray(input_labels)
    lengths = (labels_np != 0).sum(axis=1).astype(np.int32)
    max_t = max(int(lengths.max()), 1)
    labels = jnp.asarray(labels_np[:, :max_t], dtype=jnp.int32)
    emb = params['emb_table'][labels].astype(jnp.bfloat16)
    mlp = jnp.dot(emb, params['mlp_w'].astype(jnp.bfloat16),
                  preferred_element_type=jnp.float32) + params['mlp_b'][0]
    mlp = jnp.maximum(mlp, 0.0)
    mask = (jnp.arange(max_t)[None, :] < jnp.asarray(lengths)[:, None]
            ).astype(jnp.float32)[..., None]
    emb_m = mlp * mask
    B = labels.shape[0]
    H = params['whh'].shape[0]
    wih = params['wih'].astype(jnp.bfloat16)
    whh = params['whh'].astype(jnp.bfloat16)
    bias = params['b'][0]
    h = jnp.zeros((B, H), jnp.float32)
    c = jnp.zeros((B, H), jnp.float32)
    outs = []
    for t in range(max_t):
        x_t = emb_m[:, t].astype(jnp.bfloat16)
        gx = jnp.dot(x_t, wih, preferred_element_type=jnp.float32) + bias
        gx = gx.astype(jnp.bfloat16).astype(jnp.float32)        # mirror bf16 gx store
        gates = gx + jnp.dot(h.astype(jnp.bfloat16), whh,
                             preferred_element_type=jnp.float32)
        i_g = jax.nn.sigmoid(gates[:, :H])
        f_g = jax.nn.sigmoid(gates[:, H:2 * H])
        g_g = jnp.tanh(gates[:, 2 * H:3 * H])
        o_g = jax.nn.sigmoid(gates[:, 3 * H:])
        c_new = f_g * c + i_g * g_g
        h_new = o_g * jnp.tanh(c_new)
        valid = mask[:, t]
        h = jnp.where(valid > 0, h_new, h)
        c = jnp.where(valid > 0, c_new, c)
        outs.append(h_new * valid)
    return jnp.stack(outs, 1), h, emb_m


if __name__ == "__main__":
    # Small config consistent with the module's __init__.
    vocab_size = 50
    word_embedding_size = 16   # E
    word_vec_size = 16         # V
    hidden_size = 32           # H
    B, T = 2, 8

    key = jax.random.PRNGKey(0)
    k = jax.random.split(key, 6)
    params = {
        'emb_table': 0.1 * jax.random.normal(k[0], (vocab_size, word_embedding_size), jnp.float32),
        # mlp: Linear(E -> V), stored transposed for x @ W
        'mlp_w': 0.1 * jax.random.normal(k[1], (word_embedding_size, word_vec_size), jnp.float32),
        'mlp_b': 0.1 * jax.random.normal(k[2], (1, word_vec_size), jnp.float32),
        # lstm: weight_ih (4H, V) / weight_hh (4H, H) stored transposed; bias = b_ih + b_hh
        'wih': 0.1 * jax.random.normal(k[3], (word_vec_size, 4 * hidden_size), jnp.float32),
        'whh': 0.1 * jax.random.normal(k[4], (hidden_size, 4 * hidden_size), jnp.float32),
        'b': 0.1 * jax.random.normal(k[5], (1, 4 * hidden_size), jnp.float32),
    }
    # TODO(synk): `linear_trans`, `tanh`, `num_glimpse` are declared in __init__
    # but never used in forward(); omitted.

    # Right-padded token ids (0 == pad); lengths = [8, 5].
    input_labels = np.zeros((B, T), dtype=np.int32)
    input_labels[0, :8] = np.array([3, 7, 12, 5, 9, 21, 4, 8])
    input_labels[1, :5] = np.array([11, 2, 30, 6, 17])

    prepped = prepare_params(params)   # one-time weight padding / gate blocking
    output, hidden, embedded = bilstm_encoder_forward(input_labels, prepped)
    jax.block_until_ready((output, hidden, embedded))

    ref_out, ref_hid, ref_emb = _reference(input_labels, params)
    np.testing.assert_allclose(np.asarray(output), np.asarray(ref_out), rtol=5e-3, atol=5e-4)
    np.testing.assert_allclose(np.asarray(hidden), np.asarray(ref_hid), rtol=5e-3, atol=5e-4)
    np.testing.assert_allclose(np.asarray(embedded), np.asarray(ref_emb), rtol=5e-3, atol=5e-4)

    print("KERNEL_OK")
</pallas_src>

<mosaic_0001>
module attributes {stable_mosaic.version = 11 : i64} {
  func.func @ff_kernel(%arg0: i32, %arg1: memref<8x1xi32, #tpu.memory_space<vmem>>, %arg2: memref<8x8x16xbf16, #tpu.memory_space<vmem>>, %arg3: memref<16x16xbf16, #tpu.memory_space<vmem>>, %arg4: memref<1x16xf32, #tpu.memory_space<vmem>>, %arg5: memref<16x512xbf16, #tpu.memory_space<vmem>>, %arg6: memref<1x512xf32, #tpu.memory_space<vmem>>, %arg7: memref<8x8x16xf32, #tpu.memory_space<vmem>>, %arg8: memref<8x8x512xbf16, #tpu.memory_space<vmem>>) attributes {dimension_semantics = [#tpu.dimension_semantics<parallel>], iteration_bounds = array<i64: 1>, scalar_prefetch = 0 : i64, scratch_operands = 0 : i64, tpu.core_type = #tpu.core_type<tc>, window_params = [{pipeline_mode = #tpu.pipeline_mode<synchronous>, transform_indices = @transform_0, window_bounds = array<i64: 8, 1>}, {transform_indices = @transform_1, window_bounds = array<i64: 8, 8, 16>}, {pipeline_mode = #tpu.pipeline_mode<synchronous>, transform_indices = @transform_2, window_bounds = array<i64: 16, 16>}, {pipeline_mode = #tpu.pipeline_mode<synchronous>, transform_indices = @transform_3, window_bounds = array<i64: 1, 16>}, {pipeline_mode = #tpu.pipeline_mode<synchronous>, transform_indices = @transform_4, window_bounds = array<i64: 16, 512>}, {pipeline_mode = #tpu.pipeline_mode<synchronous>, transform_indices = @transform_5, window_bounds = array<i64: 1, 512>}, {transform_indices = @transform_6, window_bounds = array<i64: 8, 8, 16>}, {transform_indices = @transform_7, window_bounds = array<i64: 8, 8, 512>}]} {
    %c0 = arith.constant 0 : index
    %c0_0 = arith.constant 0 : index
    %c0_1 = arith.constant 0 : index
    %0 = vector.load %arg2[%c0, %c0_0, %c0_1] : memref<8x8x16xbf16, #tpu.memory_space<vmem>>, vector<8x8x16xbf16>
    %1 = vector.shape_cast %0 : vector<8x8x16xbf16> to vector<64x16xbf16>
    %c0_2 = arith.constant 0 : index
    %c0_3 = arith.constant 0 : index
    %2 = vector.load %arg3[%c0_2, %c0_3] : memref<16x16xbf16, #tpu.memory_space<vmem>>, vector<16x16xbf16>
    %cst = arith.constant dense<0.000000e+00> : vector<64x16xf32>
    %3 = tpu.matmul %1, %2, %cst {dimension_numbers = #tpu.dot_dimension_numbers<[1], [0], [0], [1], [0, 0, 1, 1], [], []>} : vector<64x16xbf16>, vector<16x16xbf16>, vector<64x16xf32> -> vector<64x16xf32>
    %c0_4 = arith.constant 0 : index
    %c0_5 = arith.constant 0 : index
    %4 = vector.load %arg4[%c0_4, %c0_5] : memref<1x16xf32, #tpu.memory_space<vmem>>, vector<1x16xf32>
    %5 = vector.broadcast %4 : vector<1x16xf32> to vector<64x16xf32>
    %6 = arith.addf %3, %5 : vector<64x16xf32>
    %cst_6 = arith.constant 0.000000e+00 : f32
    %7 = vector.broadcast %cst_6 : f32 to vector<64x16xf32>
    %8 = arith.maximumf %6, %7 : vector<64x16xf32>
    %c8_i32 = arith.constant 8 : i32
    %9 = arith.muli %arg0, %c8_i32 : i32
    %10 = tpu.iota {dimensions = array<i32: 0>} : vector<8x8x1xi32>
    %11 = vector.broadcast %9 : i32 to vector<8x8x1xi32>
    %12 = arith.addi %11, %10 : vector<8x8x1xi32>
    %c0_7 = arith.constant 0 : index
    %c0_8 = arith.constant 0 : index
    %13 = vector.load %arg1[%c0_7, %c0_8] : memref<8x1xi32, #tpu.memory_space<vmem>>, vector<8x1xi32>
    %14 = vector.shape_cast %13 : vector<8x1xi32> to vector<1x8x1xi32>
    %15 = vector.broadcast %14 : vector<1x8x1xi32> to vector<8x8x1xi32>
    %16 = arith.cmpi slt, %12, %15 : vector<8x8x1xi32>
    %17 = arith.extui %16 : vector<8x8x1xi1> to vector<8x8x1xi32>
    %18 = arith.sitofp %17 : vector<8x8x1xi32> to vector<8x8x1xf32>
    %19 = vector.shape_cast %18 : vector<8x8x1xf32> to vector<64x1xf32>
    %20 = vector.broadcast %19 : vector<64x1xf32> to vector<64x16xf32>
    %21 = arith.mulf %8, %20 : vector<64x16xf32>
    %22 = vector.shape_cast %21 : vector<64x16xf32> to vector<8x8x16xf32>
    %c0_9 = arith.constant 0 : index
    %c0_10 = arith.constant 0 : index
    %c0_11 = arith.constant 0 : index
    %23 = vector.load %arg7[%c0_9, %c0_10, %c0_11] : memref<8x8x16xf32, #tpu.memory_space<vmem>>, vector<8x8x16xf32>
    tpu.vector_store %arg7[%c0_9, %c0_10, %c0_11], %22 {strides = array<i32>} : memref<8x8x16xf32, #tpu.memory_space<vmem>>, vector<8x8x16xf32>,
    %24 = arith.truncf %21 : vector<64x16xf32> to vector<64x16xbf16>
    %c0_12 = arith.constant 0 : index
    %c0_13 = arith.constant 0 : index
    %25 = vector.load %arg5[%c0_12, %c0_13] : memref<16x512xbf16, #tpu.memory_space<vmem>>, vector<16x512xbf16>
    %cst_14 = arith.constant dense<0.000000e+00> : vector<64x512xf32>
    %26 = tpu.matmul %24, %25, %cst_14 {dimension_numbers = #tpu.dot_dimension_numbers<[1], [0], [0], [1], [0, 0, 1, 1], [], []>} : vector<64x16xbf16>, vector<16x512xbf16>, vector<64x512xf32> -> vector<64x512xf32>
    %c0_15 = arith.constant 0 : index
    %c0_16 = arith.constant 0 : index
    %27 = vector.load %arg6[%c0_15, %c0_16] : memref<1x512xf32, #tpu.memory_space<vmem>>, vector<1x512xf32>
    %28 = vector.broadcast %27 : vector<1x512xf32> to vector<64x512xf32>
    %29 = arith.addf %26, %28 : vector<64x512xf32>
    %30 = vector.shape_cast %29 : vector<64x512xf32> to vector<8x8x512xf32>
    %31 = arith.truncf %30 : vector<8x8x512xf32> to vector<8x8x512xbf16>
    %c0_17 = arith.constant 0 : index
    %c0_18 = arith.constant 0 : index
    %c0_19 = arith.constant 0 : index
    %32 = vector.load %arg8[%c0_17, %c0_18, %c0_19] : memref<8x8x512xbf16, #tpu.memory_space<vmem>>, vector<8x8x512xbf16>
    tpu.vector_store %arg8[%c0_17, %c0_18, %c0_19], %31 {strides = array<i32>} : memref<8x8x512xbf16, #tpu.memory_space<vmem>>, vector<8x8x512xbf16>,
    return
  }
  func.func @transform_0(%arg0: i32) -> (i32, i32) {
    %c0_i32 = arith.constant 0 : i32
    %c0_i32_0 = arith.constant 0 : i32
    %c0_i32_1 = arith.constant 0 : i32
    return %c0_i32, %c0_i32_0 : i32, i32
  }
  func.func @transform_1(%arg0: i32) -> (i32, i32, i32) {
    %c0_i32 = arith.constant 0 : i32
    %c0_i32_0 = arith.constant 0 : i32
    %c0_i32_1 = arith.constant 0 : i32
    return %arg0, %c0_i32, %c0_i32_0 : i32, i32, i32
  }
  func.func @transform_2(%arg0: i32) -> (i32, i32) {
    %c0_i32 = arith.constant 0 : i32
    %c0_i32_0 = arith.constant 0 : i32
    %c0_i32_1 = arith.constant 0 : i32
    return %c0_i32, %c0_i32_0 : i32, i32
  }
  func.func @transform_3(%arg0: i32) -> (i32, i32) {
    %c0_i32 = arith.constant 0 : i32
    %c0_i32_0 = arith.constant 0 : i32
    %c0_i32_1 = arith.constant 0 : i32
    return %c0_i32, %c0_i32_0 : i32, i32
  }
  func.func @transform_4(%arg0: i32) -> (i32, i32) {
    %c0_i32 = arith.constant 0 : i32
    %c0_i32_0 = arith.constant 0 : i32
    %c0_i32_1 = arith.constant 0 : i32
    return %c0_i32, %c0_i32_0 : i32, i32
  }
  func.func @transform_5(%arg0: i32) -> (i32, i32) {
    %c0_i32 = arith.constant 0 : i32
    %c0_i32_0 = arith.constant 0 : i32
    %c0_i32_1 = arith.constant 0 : i32
    return %c0_i32, %c0_i32_0 : i32, i32
  }
  func.func @transform_6(%arg0: i32) -> (i32, i32, i32) {
    %c0_i32 = arith.constant 0 : i32
    %c0_i32_0 = arith.constant 0 : i32
    %c0_i32_1 = arith.constant 0 : i32
    return %arg0, %c0_i32, %c0_i32_0 : i32, i32, i32
  }
  func.func @transform_7(%arg0: i32) -> (i32, i32, i32) {
    %c0_i32 = arith.constant 0 : i32
    %c0_i32_0 = arith.constant 0 : i32
    %c0_i32_1 = arith.constant 0 : i32
    return %arg0, %c0_i32, %c0_i32_0 : i32, i32, i32
  }
}

</mosaic_0001>

<llo_original>
// kernel: tpu_custom_call.1
$region0: #{tpu_custom_call.1}
  #allocation0 [shape = 'u32[]', space=smem, size = 0x4, offset = 0x4, fixed_abs, tag = 'smem constant byte address 0x4 - core index']
  #allocation1 [shape = 'u32[144,128]{1,0:T(1,128)}', space=vmem, size = 0x12000, scoped, tag = 'internal scratch']
  %s0 = inlined_call_operand.vmem [shape: s32[8,1], index: 0, kind: input, shape index: {}]
  %s1 = inlined_call_operand.hbm [shape: bf16[8,8,16], index: 1, kind: input, shape index: {}]
  %s2 = inlined_call_operand.vmem [shape: bf16[16,16], index: 2, kind: input, shape index: {}]
  %s3 = inlined_call_operand.vmem [shape: f32[1,16], index: 3, kind: input, shape index: {}]
  %s4 = inlined_call_operand.hbm [shape: bf16[16,512], index: 4, kind: input, shape index: {}]
  %s5 = inlined_call_operand.vmem [shape: f32[1,512], index: 5, kind: input, shape index: {}]
  %s6 = inlined_call_operand.hbm [shape: f32[8,8,16], index: 6, kind: output, shape index: {0}]
  %s7 = inlined_call_operand.hbm [shape: bf16[8,8,512], index: 7, kind: output, shape index: {1}]
  %8 = xla_tuple %s6, %s7
  %s9 = sld [smem:[#allocation0]]
  $region50: #{tpu_custom_call.1} parent=0
    _
  %s11 = ssub.s32 1, %s9
  %s12 = scalar_select 0, %s11, %s9
  $region1: #{tpu_custom_call.1} parent=0
    #allocation2 [shape = 'u8[16384]{0}', space=vmem, size = 0x4000, scoped, tag = 'input window, operand 1, single buffered']
    #allocation3 [shape = 's32[1]{0}', space=sflag, size = 0x4, scoped, tag = 'scoped memory for tpu_custom_call.1']
    #allocation4 [shape = 's32[1]{0}', space=sflag, size = 0x4, scoped, tag = 'scoped memory for tpu_custom_call.1']
    #allocation5 [shape = 'u8[16384]{0}', space=vmem, size = 0x4000, scoped, tag = 'input window, operand 4, single buffered']
    #allocation6 [shape = 's32[1]{0}', space=sflag, size = 0x4, scoped, tag = 'scoped memory for tpu_custom_call.1']
    #allocation7 [shape = 'u8[32768]{0}', space=vmem, size = 0x8000, scoped, tag = 'output window, operand 0, single buffered']
    #allocation8 [shape = 'u8[65536]{0}', space=vmem, size = 0x10000, scoped, tag = 'output window, operand 1, single buffered']
    #allocation9 [shape = 's32[1]{0}', space=sflag, size = 0x4, scoped, tag = 'scoped memory for tpu_custom_call.1']
    %13 = vsyncpa [#allocation3], 0
    %14 = vsyncpa [#allocation6], 0
    %15 = vsyncpa [#allocation4], 0
    %16 = vsyncpa [#allocation9], 0
    // Predicated region
    $region2: #{tpu_custom_call.1} parent=1 // pred_check
      _
    $region3: #{tpu_custom_call.1} parent=1 // pred_check_branch
      %18 = sbr.rel (0) target = $region5
    $region4: #{tpu_custom_call.1} parent=1 // pred_region
      _
    $region5: #{tpu_custom_call.1} parent=1 // pred_fallthru
      _
    // Predicated region
    $region6: #{tpu_custom_call.1} parent=1 // pred_check
      _
    $region7: #{tpu_custom_call.1} parent=1 // pred_check_branch
      %20 = sbr.rel (0) target = $region9
    $region8: #{tpu_custom_call.1} parent=1 // pred_region
      %s22 = ssub.s32 512, 512
      %23 = vsyncadd [#allocation3], %s22
      %s24 = sshll.u32 [#allocation2], 4
      %s25 = int_to_ptr.vmem [resolvable:$true] %s24
      %30 = dma.hbm_to_vmem [thread:$0]  %s1, 512, %s25, [#allocation3], 64, 64, 4
    $region9: #{tpu_custom_call.1} parent=1 // pred_fallthru
      _
    // Predicated region
    $region10: #{tpu_custom_call.1} parent=1 // pred_check
      _
    $region11: #{tpu_custom_call.1} parent=1 // pred_check_branch
      %32 = sbr.rel (0) target = $region13
    $region12: #{tpu_custom_call.1} parent=1 // pred_region
      _
    $region13: #{tpu_custom_call.1} parent=1 // pred_fallthru
      _
    // Predicated region
    $region14: #{tpu_custom_call.1} parent=1 // pred_check
      _
    $region15: #{tpu_custom_call.1} parent=1 // pred_check_branch
      %34 = sbr.rel (0) target = $region17
    $region16: #{tpu_custom_call.1} parent=1 // pred_region
      _
    $region17: #{tpu_custom_call.1} parent=1 // pred_fallthru
      _
    // Predicated region
    $region18: #{tpu_custom_call.1} parent=1 // pred_check
      _
    $region19: #{tpu_custom_call.1} parent=1 // pred_check_branch
      %36 = sbr.rel (0) target = $region21
    $region20: #{tpu_custom_call.1} parent=1 // pred_region
      %s38 = ssub.s32 512, 512
      %39 = vsyncadd [#allocation6], %s38
      %s40 = sshll.u32 [#allocation5], 4
      %s41 = int_to_ptr.vmem [resolvable:$true] %s40
      %46 = dma.hbm_to_vmem [thread:$0]  %s4, 512, %s41, [#allocation6], 256, 256, 16
    $region21: #{tpu_custom_call.1} parent=1 // pred_fallthru
      _
    // Predicated region
    $region22: #{tpu_custom_call.1} parent=1 // pred_check
      _
    $region23: #{tpu_custom_call.1} parent=1 // pred_check_branch
      %48 = sbr.rel (0) target = $region25
    $region24: #{tpu_custom_call.1} parent=1 // pred_region
      _
    $region25: #{tpu_custom_call.1} parent=1 // pred_fallthru
      _
    // Predicated region
    $region26: #{tpu_custom_call.1} parent=1 // pred_check
      _
    $region27: #{tpu_custom_call.1} parent=1 // pred_check_branch
      %50 = sbr.rel (0) target = $region29
    $region28: #{tpu_custom_call.1} parent=1 // pred_region
      %51 = dma.done [#allocation3], 512
    $region29: #{tpu_custom_call.1} parent=1 // pred_fallthru
      _
    // Predicated region
    $region30: #{tpu_custom_call.1} parent=1 // pred_check
      _
    $region31: #{tpu_custom_call.1} parent=1 // pred_check_branch
      %53 = sbr.rel (0) target = $region33
    $region32: #{tpu_custom_call.1} parent=1 // pred_region
      %54 = dma.done [#allocation6], 512
    $region33: #{tpu_custom_call.1} parent=1 // pred_fallthru
      _
    %v56 = vld [vmem:[#allocation2] sm:$0xf]
    %v57 = vld [vmem:[#allocation2 + $0x4] sm:$0xf]
    %v58 = vld [vmem:[#allocation2 + $0x8] sm:$0xf]
    %v59 = vld [vmem:[#allocation2 + $0xc] sm:$0xf]
    %v60 = vld [vmem:[#allocation2 + $0x10] sm:$0xf]
    %v61 = vld [vmem:[#allocation2 + $0x14] sm:$0xf]
    %v62 = vld [vmem:[#allocation2 + $0x18] sm:$0xf]
    %v63 = vld [vmem:[#allocation2 + $0x1c] sm:$0xf]
    %v64 = vld [vmem:[%s2] sm:$0xf]
    %v65 = vld [vmem:[%s2 + $0x4] sm:$0xf]
    %v66 = vld [vmem:[%s3] sm:$0x1]
    %v68 = vlaneseq
    %v69 = vshrl.u32 %v68, 7
    %v70 = vsub.s32 0, %v69
    %v71 = vrot.slane %v66, %v70
    %v81 = vunpack.c.l.b16 %v56
    %v82 = vunpack.c.l.b16 %v57
    %v83 = vunpack.c.l.b16 %v58
    %v84 = vunpack.c.l.b16 %v59
    %v85 = vunpack.c.l.b16 %v60
    %v86 = vunpack.c.l.b16 %v61
    %v87 = vunpack.c.l.b16 %v62
    %v88 = vunpack.c.l.b16 %v63
    %v89 = vpack.c.b16 %v82, %v81
    %v90 = vpack.c.b16 %v84, %v83
    %v91 = vpack.c.b16 %v86, %v85
    %v92 = vpack.c.b16 %v88, %v87
    %v95 = vunpack.c.l.b16 %v64
    %v96 = vunpack.c.l.b16 %v65
    %v97 = vpack.c.b16 %v96, %v95
    %vm99 = vcmask 130048
    %v101 = vsel %vm99, %v89, 0
    %v104 = vsel %vm99, %v90, 0
    %v107 = vsel %vm99, %v91, 0
    %v110 = vsel %vm99, %v92, 0
    %112 = vmatprep.subr.bf16.mxu0 0
    %113 = vmatpush1.bf16.msra.mxu0 %v97
    %114 = vmatprep.subr.bf16.mxu0 0
    %115 = vmatpush1.bf16.msra.mxu0 0
    %116 = vmatprep.subr.bf16.mxu0 0
    %117 = vmatpush1.bf16.msra.mxu0 0
    %118 = vmatprep.subr.bf16.mxu0 0
    %119 = vmatpush1.bf16.msra.mxu0 0
    %120 = vmatprep.subr.bf16.mxu0 0
    %121 = vmatpush1.bf16.msra.mxu0 0
    %122 = vmatprep.subr.bf16.mxu0 0
    %123 = vmatpush1.bf16.msra.mxu0 0
    %124 = vmatprep.subr.bf16.mxu0 0
    %125 = vmatpush1.bf16.msra.mxu0 0
    %126 = vmatprep.subr.bf16.mxu0 0
    %127 = vmatpush1.bf16.msra.mxu0 0
    %128 = vmatprep.subr.bf16.mxu0 0
    %129 = vmatpush1.bf16.msra.mxu0 0
    %130 = vmatprep.subr.bf16.mxu0 0
    %131 = vmatpush1.bf16.msra.mxu0 0
    %132 = vmatprep.subr.bf16.mxu0 0
    %133 = vmatpush1.bf16.msra.mxu0 0
    %134 = vmatprep.subr.bf16.mxu0 0
    %135 = vmatpush1.bf16.msra.mxu0 0
    %136 = vmatprep.subr.bf16.mxu0 0
    %137 = vmatpush1.bf16.msra.mxu0 0
    %138 = vmatprep.subr.bf16.mxu0 0
    %139 = vmatpush1.bf16.msra.mxu0 0
    %140 = vmatprep.subr.bf16.mxu0 0
    %141 = vmatpush1.bf16.msra.mxu0 0
    %142 = vmatprep.subr.bf16.mxu0 0
    %143 = vmatpush1.bf16.msra.mxu0 0
    %144 = vmatprep.mubr.bf16.mxu0 0
    %145 = vmatmul.mubr.bf16.gmra.mrb[0].mxu0 %v101
    %v146 = vpop.f32.mrb[0].mxu0
    %v147 = vadd.f32 %v71, %v146
    %v148 = vpop.f32.mrb[0].mxu0
    %v149 = vpop.f32.mrb[0].mxu0
    %v150 = vadd.f32 %v71, %v149
    %v151 = vpop.f32.mrb[0].mxu0
    %152 = vmatprep.mubr.bf16.mxu0 0
    %153 = vmatmul.mubr.bf16.gmra.mrb[0].mxu0 %v104
    %v154 = vpop.f32.mrb[0].mxu0
    %v155 = vadd.f32 %v71, %v154
    %v156 = vpop.f32.mrb[0].mxu0
    %v157 = vpop.f32.mrb[0].mxu0
    %v158 = vadd.f32 %v71, %v157
    %v159 = vpop.f32.mrb[0].mxu0
    %160 = vmatprep.mubr.bf16.mxu0 0
    %161 = vmatmul.mubr.bf16.gmra.mrb[0].mxu0 %v107
    %v162 = vpop.f32.mrb[0].mxu0
    %v163 = vadd.f32 %v71, %v162
    %v164 = vpop.f32.mrb[0].mxu0
    %v165 = vpop.f32.mrb[0].mxu0
    %v166 = vadd.f32 %v71, %v165
    %v167 = vpop.f32.mrb[0].mxu0
    %168 = vmatprep.mubr.bf16.mxu0 0
    %169 = vmatmul.mubr.bf16.gmra.mrb[0].mxu0 %v110
    %v170 = vpop.f32.mrb[0].mxu0
    %v171 = vadd.f32 %v71, %v170
    %v172 = vpop.f32.mrb[0].mxu0
    %v173 = vpop.f32.mrb[0].mxu0
    %v174 = vadd.f32 %v71, %v173
    %v175 = vpop.f32.mrb[0].mxu0
    %176 = vdwg.mxu0
    %v177 = vmax.f32 %v147, 0.0
    %v178 = vmax.f32 %v150, 0.0
    %v179 = vmax.f32 %v155, 0.0
    %v180 = vmax.f32 %v158, 0.0
    %v181 = vmax.f32 %v163, 0.0
    %v182 = vmax.f32 %v166, 0.0
    %v183 = vmax.f32 %v171, 0.0
    %v184 = vmax.f32 %v174, 0.0
    %s185 = smul.u32 0, 8
    %v186 = vstv %s185
    %v187 = vadd.s32 %v186, 1
    %v188 = vadd.s32 %v186, 2
    %v189 = vadd.s32 %v186, 3
    %v190 = vadd.s32 %v186, 4
    %v191 = vadd.s32 %v186, 5
    %v192 = vadd.s32 %v186, 6
    %v193 = vadd.s32 %v186, 7
    %v194 = vld [vmem:[%s0] sm:$0xff]
    %vm195 = vcmp.lt.s32.totalorder %v186, %v194
    %vm196 = vcmp.lt.s32.totalorder %v187, %v194
    %vm197 = vcmp.lt.s32.totalorder %v188, %v194
    %vm198 = vcmp.lt.s32.totalorder %v189, %v194
    %vm199 = vcmp.lt.s32.totalorder %v190, %v194
    %vm200 = vcmp.lt.s32.totalorder %v191, %v194
    %vm201 = vcmp.lt.s32.totalorder %v192, %v194
    %vm202 = vcmp.lt.s32.totalorder %v193, %v194
    %v203 = vsel %vm195, 1, 0
    %v204 = vsel %vm196, 1, 0
    %v205 = vsel %vm197, 1, 0
    %v206 = vsel %vm198, 1, 0
    %v207 = vsel %vm199, 1, 0
    %v208 = vsel %vm200, 1, 0
    %v209 = vsel %vm201, 1, 0
    %v210 = vsel %vm202, 1, 0
    %v211 = vcvt.s32.f32 %v203
    %v212 = vcvt.s32.f32 %v204
    %v213 = vcvt.s32.f32 %v205
    %v214 = vcvt.s32.f32 %v206
    %v215 = vcvt.s32.f32 %v207
    %v216 = vcvt.s32.f32 %v208
    %v217 = vcvt.s32.f32 %v209
    %v218 = vcvt.s32.f32 %v210
    %220 = vset.pattern.permute.xlu0 0
    %221 = vperm.xlu0 %220, %v211
    %v222 = vpop.permute.xlu0 %221
    %225 = vset.pattern.permute.xlu0 0
    %226 = vperm.xlu0 %225, %v212
    %v227 = vpop.permute.xlu0 %226
    %230 = vset.pattern.permute.xlu0 0
    %231 = vperm.xlu0 %230, %v213
    %v232 = vpop.permute.xlu0 %231
    %235 = vset.pattern.permute.xlu0 0
    %236 = vperm.xlu0 %235, %v214
    %v237 = vpop.permute.xlu0 %236
    %240 = vset.pattern.permute.xlu0 0
    %241 = vperm.xlu0 %240, %v215
    %v242 = vpop.permute.xlu0 %241
    %245 = vset.pattern.permute.xlu0 0
    %246 = vperm.xlu0 %245, %v216
    %v247 = vpop.permute.xlu0 %246
    %250 = vset.pattern.permute.xlu0 0
    %251 = vperm.xlu0 %250, %v217
    %v252 = vpop.permute.xlu0 %251
    %255 = vset.pattern.permute.xlu0 0
    %256 = vperm.xlu0 %255, %v218
    %v257 = vpop.permute.xlu0 %256
    %v259 = vmul.f32 %v177, %v222
    %v260 = vmul.f32 %v178, %v227
    %v261 = vmul.f32 %v179, %v232
    %v262 = vmul.f32 %v180, %v237
    %v263 = vmul.f32 %v181, %v242
    %v264 = vmul.f32 %v182, %v247
    %v265 = vmul.f32 %v183, %v252
    %v266 = vmul.f32 %v184, %v257
    %267 = vst.msk [vmem:[#allocation7] sm:$0xff] %vm99, %v259
    %268 = vst.msk [vmem:[#allocation7 + $0x8] sm:$0xff] %vm99, %v260
    %269 = vst.msk [vmem:[#allocation7 + $0x10] sm:$0xff] %vm99, %v261
    %270 = vst.msk [vmem:[#allocation7 + $0x18] sm:$0xff] %vm99, %v262
    %271 = vst.msk [vmem:[#allocation7 + $0x20] sm:$0xff] %vm99, %v263
    %272 = vst.msk [vmem:[#allocation7 + $0x28] sm:$0xff] %vm99, %v264
    %273 = vst.msk [vmem:[#allocation7 + $0x30] sm:$0xff] %vm99, %v265
    %274 = vst.msk [vmem:[#allocation7 + $0x38] sm:$0xff] %vm99, %v266
    %v275 = vpack.c.bf16 %v260, %v259
    %v276 = vpack.c.bf16 %v262, %v261
    %v277 = vpack.c.bf16 %v264, %v263
    %v278 = vpack.c.bf16 %v266, %v265
    %v279 = vld [vmem:[#allocation5] sm:$0xff]
    %v280 = vld [vmem:[#allocation5 + $0x8] sm:$0xff]
    %v281 = vld [vmem:[#allocation5 + $0x10] sm:$0xff]
    %v282 = vld [vmem:[#allocation5 + $0x18] sm:$0xff]
    %v283 = vld [vmem:[%s5] sm:$0xf]
    %v285 = vlaneseq
    %v286 = vshrl.u32 %v285, 7
    %v287 = vsub.s32 0, %v286
    %v288 = vrot.slane %v283, %v287
    %v289 = vlaneseq
    %v290 = vshrl.u32 %v289, 7
    %v291 = vsub.s32 1, %v290
    %v292 = vrot.slane %v283, %v291
    %v293 = vlaneseq
    %v294 = vshrl.u32 %v293, 7
    %v295 = vsub.s32 2, %v294
    %v296 = vrot.slane %v283, %v295
    %v297 = vlaneseq
    %v298 = vshrl.u32 %v297, 7
    %v299 = vsub.s32 3, %v298
    %v300 = vrot.slane %v283, %v299
    %v309 = vunpack.c.l.b16 %v279
    %v310 = vunpack.c.h.b16 %v279
    %v311 = vunpack.c.l.b16 %v280
    %v312 = vunpack.c.h.b16 %v280
    %v313 = vunpack.c.l.b16 %v281
    %v314 = vunpack.c.h.b16 %v281
    %v315 = vunpack.c.l.b16 %v282
    %v316 = vunpack.c.h.b16 %v282
    %v317 = vpack.c.b16 %v313, %v309
    %v318 = vpack.c.b16 %v314, %v310
    %v319 = vpack.c.b16 %v315, %v311
    %v320 = vpack.c.b16 %v316, %v312
    %v326 = vsel %vm99, %v275, 0
    %v329 = vsel %vm99, %v276, 0
    %v332 = vsel %vm99, %v277, 0
    %v335 = vsel %vm99, %v278, 0
    %337 = vmatprep.subr.bf16.mxu0 %v318
    %338 = vmatpush1.bf16.msra.mxu0 %v317
    %339 = vmatprep.subr.bf16.mxu0 0
    %340 = vmatpush1.bf16.msra.mxu0 0
    %341 = vmatprep.subr.bf16.mxu0 0
    %342 = vmatpush1.bf16.msra.mxu0 0
    %343 = vmatprep.subr.bf16.mxu0 0
    %344 = vmatpush1.bf16.msra.mxu0 0
    %345 = vmatprep.subr.bf16.mxu0 0
    %346 = vmatpush1.bf16.msra.mxu0 0
    %347 = vmatprep.subr.bf16.mxu0 0
    %348 = vmatpush1.bf16.msra.mxu0 0
    %349 = vmatprep.subr.bf16.mxu0 0
    %350 = vmatpush1.bf16.msra.mxu0 0
    %351 = vmatprep.subr.bf16.mxu0 0
    %352 = vmatpush1.bf16.msra.mxu0 0
    %353 = vmatprep.subr.bf16.mxu0 0
    %354 = vmatpush1.bf16.msra.mxu0 0
    %355 = vmatprep.subr.bf16.mxu0 0
    %356 = vmatpush1.bf16.msra.mxu0 0
    %357 = vmatprep.subr.bf16.mxu0 0
    %358 = vmatpush1.bf16.msra.mxu0 0
    %359 = vmatprep.subr.bf16.mxu0 0
    %360 = vmatpush1.bf16.msra.mxu0 0
    %361 = vmatprep.subr.bf16.mxu0 0
    %362 = vmatpush1.bf16.msra.mxu0 0
    %363 = vmatprep.subr.bf16.mxu0 0
    %364 = vmatpush1.bf16.msra.mxu0 0
    %365 = vmatprep.subr.bf16.mxu0 0
    %366 = vmatpush1.bf16.msra.mxu0 0
    %367 = vmatprep.subr.bf16.mxu0 0
    %368 = vmatpush1.bf16.msra.mxu0 0
    %369 = vmatprep.mubr.bf16.mxu0 0
    %370 = vmatmul.mubr.bf16.gmra.mrb[0].mxu0 %v326
    %v371 = vpop.f32.mrb[0].mxu0
    %v372 = vadd.f32 %v288, %v371
    %v373 = vpop.f32.mrb[0].mxu0
    %v374 = vadd.f32 %v292, %v373
    %v375 = vpop.f32.mrb[0].mxu0
    %v376 = vadd.f32 %v288, %v375
    %v377 = vpop.f32.mrb[0].mxu0
    %v378 = vadd.f32 %v292, %v377
    %379 = vmatprep.mubr.bf16.mxu0 0
    %380 = vmatmul.mubr.bf16.gmra.mrb[0].mxu0 %v329
    %v381 = vpop.f32.mrb[0].mxu0
    %v382 = vadd.f32 %v288, %v381
    %v383 = vpop.f32.mrb[0].mxu0
    %v384 = vadd.f32 %v292, %v383
    %v385 = vpop.f32.mrb[0].mxu0
    %v386 = vadd.f32 %v288, %v385
    %v387 = vpop.f32.mrb[0].mxu0
    %v388 = vadd.f32 %v292, %v387
    %389 = vmatprep.mubr.bf16.mxu0 0
    %390 = vmatmul.mubr.bf16.gmra.mrb[0].mxu0 %v332
    %v391 = vpop.f32.mrb[0].mxu0
    %v392 = vadd.f32 %v288, %v391
    %v393 = vpop.f32.mrb[0].mxu0
    %v394 = vadd.f32 %v292, %v393
    %v395 = vpop.f32.mrb[0].mxu0
    %v396 = vadd.f32 %v288, %v395
    %v397 = vpop.f32.mrb[0].mxu0
    %v398 = vadd.f32 %v292, %v397
    %399 = vmatprep.mubr.bf16.mxu0 0
    %400 = vmatmul.mubr.bf16.gmra.mrb[0].mxu0 %v335
    %v401 = vpop.f32.mrb[0].mxu0
    %v402 = vadd.f32 %v288, %v401
    %v403 = vpop.f32.mrb[0].mxu0
    %v404 = vadd.f32 %v292, %v403
    %v405 = vpop.f32.mrb[0].mxu0
    %v406 = vadd.f32 %v288, %v405
    %v407 = vpop.f32.mrb[0].mxu0
    %v408 = vadd.f32 %v292, %v407
    %409 = vdwg.mxu0
    %410 = vmatprep.subr.bf16.mxu0 %v320
    %411 = vmatpush1.bf16.msra.mxu0 %v319
    %412 = vmatprep.subr.bf16.mxu0 0
    %413 = vmatpush1.bf16.msra.mxu0 0
    %414 = vmatprep.subr.bf16.mxu0 0
    %415 = vmatpush1.bf16.msra.mxu0 0
    %416 = vmatprep.subr.bf16.mxu0 0
    %417 = vmatpush1.bf16.msra.mxu0 0
    %418 = vmatprep.subr.bf16.mxu0 0
    %419 = vmatpush1.bf16.msra.mxu0 0
    %420 = vmatprep.subr.bf16.mxu0 0
    %421 = vmatpush1.bf16.msra.mxu0 0
    %422 = vmatprep.subr.bf16.mxu0 0
    %423 = vmatpush1.bf16.msra.mxu0 0
    %424 = vmatprep.subr.bf16.mxu0 0
    %425 = vmatpush1.bf16.msra.mxu0 0
    %426 = vmatprep.subr.bf16.mxu0 0
    %427 = vmatpush1.bf16.msra.mxu0 0
    %428 = vmatprep.subr.bf16.mxu0 0
    %429 = vmatpush1.bf16.msra.mxu0 0
    %430 = vmatprep.subr.bf16.mxu0 0
    %431 = vmatpush1.bf16.msra.mxu0 0
    %432 = vmatprep.subr.bf16.mxu0 0
    %433 = vmatpush1.bf16.msra.mxu0 0
    %434 = vmatprep.subr.bf16.mxu0 0
    %435 = vmatpush1.bf16.msra.mxu0 0
    %436 = vmatprep.subr.bf16.mxu0 0
    %437 = vmatpush1.bf16.msra.mxu0 0
    %438 = vmatprep.subr.bf16.mxu0 0
    %439 = vmatpush1.bf16.msra.mxu0 0
    %440 = vmatprep.subr.bf16.mxu0 0
    %441 = vmatpush1.bf16.msra.mxu0 0
    %442 = vmatprep.mubr.bf16.mxu0 0
    %443 = vmatmul.mubr.bf16.gmra.mrb[0].mxu0 %v326
    %v444 = vpop.f32.mrb[0].mxu0
    %v445 = vadd.f32 %v296, %v444
    %v446 = vpop.f32.mrb[0].mxu0
    %v447 = vadd.f32 %v300, %v446
    %v448 = vpop.f32.mrb[0].mxu0
    %v449 = vadd.f32 %v296, %v448
    %v450 = vpop.f32.mrb[0].mxu0
    %v451 = vadd.f32 %v300, %v450
    %452 = vmatprep.mubr.bf16.mxu0 0
    %453 = vmatmul.mubr.bf16.gmra.mrb[0].mxu0 %v329
    %v454 = vpop.f32.mrb[0].mxu0
    %v455 = vadd.f32 %v296, %v454
    %v456 = vpop.f32.mrb[0].mxu0
    %v457 = vadd.f32 %v300, %v456
    %v458 = vpop.f32.mrb[0].mxu0
    %v459 = vadd.f32 %v296, %v458
    %v460 = vpop.f32.mrb[0].mxu0
    %v461 = vadd.f32 %v300, %v460
    %462 = vmatprep.mubr.bf16.mxu0 0
    %463 = vmatmul.mubr.bf16.gmra.mrb[0].mxu0 %v332
    %v464 = vpop.f32.mrb[0].mxu0
    %v465 = vadd.f32 %v296, %v464
    %v466 = vpop.f32.mrb[0].mxu0
    %v467 = vadd.f32 %v300, %v466
    %v468 = vpop.f32.mrb[0].mxu0
    %v469 = vadd.f32 %v296, %v468
    %v470 = vpop.f32.mrb[0].mxu0
    %v471 = vadd.f32 %v300, %v470
    %472 = vmatprep.mubr.bf16.mxu0 0
    %473 = vmatmul.mubr.bf16.gmra.mrb[0].mxu0 %v335
    %v474 = vpop.f32.mrb[0].mxu0
    %v475 = vadd.f32 %v296, %v474
    %v476 = vpop.f32.mrb[0].mxu0
    %v477 = vadd.f32 %v300, %v476
    %v478 = vpop.f32.mrb[0].mxu0
    %v479 = vadd.f32 %v296, %v478
    %v480 = vpop.f32.mrb[0].mxu0
    %v481 = vadd.f32 %v300, %v480
    %482 = vdwg.mxu0
    %v483 = vpack.c.bf16 %v372, %v372
    %v484 = vpack.c.bf16 %v374, %v374
    %v485 = vpack.c.bf16 %v445, %v445
    %v486 = vpack.c.bf16 %v447, %v447
    %v487 = vpack.c.bf16 %v376, %v376
    %v488 = vpack.c.bf16 %v378, %v378
    %v489 = vpack.c.bf16 %v449, %v449
    %v490 = vpack.c.bf16 %v451, %v451
    %v491 = vpack.c.bf16 %v382, %v382
    %v492 = vpack.c.bf16 %v384, %v384
    %v493 = vpack.c.bf16 %v455, %v455
    %v494 = vpack.c.bf16 %v457, %v457
    %v495 = vpack.c.bf16 %v386, %v386
    %v496 = vpack.c.bf16 %v388, %v388
    %v497 = vpack.c.bf16 %v459, %v459
    %v498 = vpack.c.bf16 %v461, %v461
    %v499 = vpack.c.bf16 %v392, %v392
    %v500 = vpack.c.bf16 %v394, %v394
    %v501 = vpack.c.bf16 %v465, %v465
    %v502 = vpack.c.bf16 %v467, %v467
    %v503 = vpack.c.bf16 %v396, %v396
    %v504 = vpack.c.bf16 %v398, %v398
    %v505 = vpack.c.bf16 %v469, %v469
    %v506 = vpack.c.bf16 %v471, %v471
    %v507 = vpack.c.bf16 %v402, %v402
    %v508 = vpack.c.bf16 %v404, %v404
    %v509 = vpack.c.bf16 %v475, %v475
    %v510 = vpack.c.bf16 %v477, %v477
    %v511 = vpack.c.bf16 %v406, %v406
    %v512 = vpack.c.bf16 %v408, %v408
    %v513 = vpack.c.bf16 %v479, %v479
    %v514 = vpack.c.bf16 %v481, %v481
    %v547 = vunpack.c.l.b16 %v483
    %v548 = vunpack.c.l.b16 %v484
    %v549 = vunpack.c.l.b16 %v485
    %v550 = vunpack.c.l.b16 %v486
    %v551 = vunpack.c.l.b16 %v487
    %v552 = vunpack.c.l.b16 %v488
    %v553 = vunpack.c.l.b16 %v489
    %v554 = vunpack.c.l.b16 %v490
    %v555 = vunpack.c.l.b16 %v491
    %v556 = vunpack.c.l.b16 %v492
    %v557 = vunpack.c.l.b16 %v493
    %v558 = vunpack.c.l.b16 %v494
    %v559 = vunpack.c.l.b16 %v495
    %v560 = vunpack.c.l.b16 %v496
    %v561 = vunpack.c.l.b16 %v497
    %v562 = vunpack.c.l.b16 %v498
    %v563 = vunpack.c.l.b16 %v499
    %v564 = vunpack.c.l.b16 %v500
    %v565 = vunpack.c.l.b16 %v501
    %v566 = vunpack.c.l.b16 %v502
    %v567 = vunpack.c.l.b16 %v503
    %v568 = vunpack.c.l.b16 %v504
    %v569 = vunpack.c.l.b16 %v505
    %v570 = vunpack.c.l.b16 %v506
    %v571 = vunpack.c.l.b16 %v507
    %v572 = vunpack.c.l.b16 %v508
    %v573 = vunpack.c.l.b16 %v509
    %v574 = vunpack.c.l.b16 %v510
    %v575 = vunpack.c.l.b16 %v511
    %v576 = vunpack.c.l.b16 %v512
    %v577 = vunpack.c.l.b16 %v513
    %v578 = vunpack.c.l.b16 %v514
    %v579 = vpack.c.b16 %v548, %v547
    %v580 = vpack.c.b16 %v550, %v549
    %v581 = vpack.c.b16 %v552, %v551
    %v582 = vpack.c.b16 %v554, %v553
    %v583 = vpack.c.b16 %v556, %v555
    %v584 = vpack.c.b16 %v558, %v557
    %v585 = vpack.c.b16 %v560, %v559
    %v586 = vpack.c.b16 %v562, %v561
    %v587 = vpack.c.b16 %v564, %v563
    %v588 = vpack.c.b16 %v566, %v565
    %v589 = vpack.c.b16 %v568, %v567
    %v590 = vpack.c.b16 %v570, %v569
    %v591 = vpack.c.b16 %v572, %v571
    %v592 = vpack.c.b16 %v574, %v573
    %v593 = vpack.c.b16 %v576, %v575
    %v594 = vpack.c.b16 %v578, %v577
    %611 = vst [vmem:[#allocation8] sm:$0xff] %v579
    %612 = vst [vmem:[#allocation8 + $0x8] sm:$0xff] %v580
    %613 = vst [vmem:[#allocation8 + $0x10] sm:$0xff] %v581
    %614 = vst [vmem:[#allocation8 + $0x18] sm:$0xff] %v582
    %615 = vst [vmem:[#allocation8 + $0x20] sm:$0xff] %v583
    %616 = vst [vmem:[#allocation8 + $0x28] sm:$0xff] %v584
    %617 = vst [vmem:[#allocation8 + $0x30] sm:$0xff] %v585
    %618 = vst [vmem:[#allocation8 + $0x38] sm:$0xff] %v586
    %619 = vst [vmem:[#allocation8 + $0x40] sm:$0xff] %v587
    %620 = vst [vmem:[#allocation8 + $0x48] sm:$0xff] %v588
    %621 = vst [vmem:[#allocation8 + $0x50] sm:$0xff] %v589
    %622 = vst [vmem:[#allocation8 + $0x58] sm:$0xff] %v590
    %623 = vst [vmem:[#allocation8 + $0x60] sm:$0xff] %v591
    %624 = vst [vmem:[#allocation8 + $0x68] sm:$0xff] %v592
    %625 = vst [vmem:[#allocation8 + $0x70] sm:$0xff] %v593
    %626 = vst [vmem:[#allocation8 + $0x78] sm:$0xff] %v594
    // Predicated region
    $region34: #{tpu_custom_call.1} parent=1 // pred_check
      _
    $region35: #{tpu_custom_call.1} parent=1 // pred_check_branch
      %628 = sbr.rel (0) target = $region37
    $region36: #{tpu_custom_call.1} parent=1 // pred_region
      %s630 = ssub.s32 1024, 1024
      %631 = vsyncadd [#allocation4], %s630
      %s632 = sshll.u32 [#allocation7], 4
      %s633 = int_to_ptr.vmem [resolvable:$true] %s632
      %638 = dma.vmem_to_hbm [thread:$0]  %s633, 1024, %s6, [#allocation4], 128, 128, 8
    $region37: #{tpu_custom_call.1} parent=1 // pred_fallthru
      _
    // Predicated region
    $region38: #{tpu_custom_call.1} parent=1 // pred_check
      _
    $region39: #{tpu_custom_call.1} parent=1 // pred_check_branch
      %640 = sbr.rel (0) target = $region41
    $region40: #{tpu_custom_call.1} parent=1 // pred_region
      %s642 = ssub.s32 2048, 2048
      %643 = vsyncadd [#allocation9], %s642
      %s644 = sshll.u32 [#allocation8], 4
      %s645 = int_to_ptr.vmem [resolvable:$true] %s644
      %650 = dma.vmem_to_hbm [thread:$0]  %s645, 2048, %s7, [#allocation9], 256, 256, 16
    $region41: #{tpu_custom_call.1} parent=1 // pred_fallthru
      _
    // Predicated region
    $region42: #{tpu_custom_call.1} parent=1 // pred_check
      _
    $region43: #{tpu_custom_call.1} parent=1 // pred_check_branch
      %652 = sbr.rel (0) target = $region45
    $region44: #{tpu_custom_call.1} parent=1 // pred_region
      %653 = dma.done [#allocation4], 1024
    $region45: #{tpu_custom_call.1} parent=1 // pred_fallthru
      _
    // Predicated region
    $region46: #{tpu_custom_call.1} parent=1 // pred_check
      _
    $region47: #{tpu_custom_call.1} parent=1 // pred_check_branch
      %655 = sbr.rel (0) target = $region49
    $region48: #{tpu_custom_call.1} parent=1 // pred_region
      %656 = dma.done [#allocation9], 2048
    $region49: #{tpu_custom_call.1} parent=1 // pred_fallthru
      _
    %657 = vsyncpa [#allocation3], 1
    %658 = vsyncpa [#allocation6], 1
    %659 = vsyncpa [#allocation4], 1
    %660 = vsyncpa [#allocation9], 1

</llo_original>
